<compile_context>
chip_gen: v7x
topology: tpu7x:2x2x1
jax: 0.10.0
libtpu: 0.0.40
codegen_flags: <defaults>
</compile_context>

<pallas_src>
import numpy as np
import jax
import jax.numpy as jnp
from jax.experimental import pallas as pl
from jax.experimental.pallas import tpu as pltpu


def _round_up(x: int, m: int) -> int:
    return (x + m - 1) // m * m


# -----------------------------------------------------------------------------
# Glue: real-DFT basis matrix matching the PyTorch `dft` helper
# (torch.fft.rfft(x, dim=1, norm="ortho"); keep all real parts, drop the
#  always-zero imaginary rows at k=0 and, for even L, at k=L/2; concat along
#  the time axis -> same (B, L, C) shape as the input).
# -----------------------------------------------------------------------------
def _make_rdft_matrix(L: int) -> np.ndarray:
    t = np.arange(L)
    re_k = np.arange(L // 2 + 1)                               # real rows
    im_k = np.arange(1, L // 2 + (0 if L % 2 == 0 else 1))     # kept imag rows
    W_re = np.cos(2.0 * np.pi * np.outer(re_k, t) / L)
    W_im = -np.sin(2.0 * np.pi * np.outer(im_k, t) / L)
    W = np.concatenate([W_re, W_im], axis=0) / np.sqrt(L)      # ortho norm
    assert W.shape == (L, L)
    return W.astype(np.float64)


# -----------------------------------------------------------------------------
# Pallas kernel: 3-layer MLP (DFT already folded into w1).
#   x:  (TB, Dp)  bf16
#   w*: bf16, b*: f32 (grid-invariant, single-buffered VMEM residents)
#   out:(TB, Lp)  bf16 (f32 accumulate, cast at the final store), lane-dense
# -----------------------------------------------------------------------------
def _freq_mlp_kernel(x_ref, w1_ref, b1_ref, w2_ref, b2_ref, w3_ref, b3_ref,
                     out_ref):
    h = jnp.dot(x_ref[...], w1_ref[...],
                preferred_element_type=jnp.float32) + b1_ref[...]
    h = jnp.maximum(h, 0.0).astype(jnp.bfloat16)     # drop to bf16 right away
    h = jnp.dot(h, w2_ref[...],
                preferred_element_type=jnp.float32) + b2_ref[...]
    h = jnp.maximum(h, 0.0).astype(jnp.bfloat16)
    out = jnp.dot(h, w3_ref[...],
                  preferred_element_type=jnp.float32) + b3_ref[...]
    out_ref[...] = out.astype(out_ref.dtype)


# -----------------------------------------------------------------------------
# Wrapper helpers
# -----------------------------------------------------------------------------
def _vmem_capacity_bytes() -> int:
    try:
        return int(pltpu.get_tpu_info().vmem_capacity_bytes)
    except Exception:
        return 64 << 20        # conservative fallback (v7x per-TC VMEM)


def _pick_batch_tiling(B: int, tb_max: int):
    """Pick (TB, Bp) bounding padded-batch waste; prefer >=2 grid steps."""
    B8 = _round_up(max(B, 1), 8)
    if B8 <= tb_max:
        # Whole batch fits one max tile: split into two tiles when possible so
        # the "parallel" grid axis gives both v7x TensorCores work.
        TB = _round_up(B8 // 2, 8) if B8 >= 16 else B8
        return TB, _round_up(B8, TB)
    # Large batch: pick the tile (multiple of 128 for the MXU M dim) that
    # minimizes padded rows; prefer the larger tile on ties.
    best_tb, best_bp = None, None
    for tb in sorted({128, 256, 512, tb_max}, reverse=True):
        if tb > tb_max:
            continue
        bp = _round_up(B, tb)
        if best_bp is None or bp < best_bp:
            best_tb, best_bp = tb, bp
    return best_tb, best_bp


# -----------------------------------------------------------------------------
# Wrapper
# -----------------------------------------------------------------------------
def freq_mlp_conditioner(observed_data, future_features, params,
                         out_dtype=jnp.bfloat16):
    """observed_data: (B, L, C); future_features: (B, Lf, Cf) or None."""
    B = observed_data.shape[0]
    latent_dim = params["latent_dim"]

    parts = [observed_data.reshape(B, -1)]
    if future_features is not None:
        parts.append(future_features.reshape(B, -1))
    x = jnp.concatenate(parts, axis=-1).astype(jnp.float32)    # (B, d_in) glue
    d_in = x.shape[1]

    Dp, Hp = params["w1"].shape
    Lp = params["w3"].shape[1]
    if d_in > Dp:
        raise ValueError(
            f"runtime input feature dim {d_in} exceeds padded weight dim {Dp}; "
            "init_params shape configuration does not match the inputs")

    vmem_cap = _vmem_capacity_bytes()
    tb_max = 1024 if vmem_cap >= (96 << 20) else 512   # bigger tiles on v5e/v6e
    TB, Bp = _pick_batch_tiling(B, tb_max)

    # VMEM budget: single-buffered weights/biases + double-buffered x/out
    # streams + the in-kernel f32/bf16 matmul intermediates + headroom.
    out_itemsize = jnp.dtype(out_dtype).itemsize
    bytes_w = (Dp * Hp + Hp * Hp + Hp * Lp) * 2 + (2 * Hp + Lp) * 4
    bytes_stream = 2 * TB * Dp * 2 + 2 * TB * Lp * out_itemsize
    bytes_inter = 2 * TB * Hp * 4 + TB * Hp * 2 + TB * Lp * 4
    need = bytes_w + bytes_stream + bytes_inter + (4 << 20)
    vmem_limit = int(min(int(vmem_cap * 0.8), max(need, 32 << 20)))

    # TODO(synk): for very large hidden sizes (w2 alone approaching ~24 MiB in
    # bf16) the all-resident-weights design should fall back to a K-tiled grid
    # over Hp with an f32 accumulator scratch instead of full residency (v7x
    # has only 64 MiB VMEM per TensorCore).

    # Zero-pad batch (M) and feature (K) dims; cast to bf16 for the MXU.
    x = jnp.pad(x, ((0, Bp - B), (0, Dp - d_in))).astype(jnp.bfloat16)

    grid = (Bp // TB,)
    batch_spec = pl.BlockSpec((TB, Dp), lambda i: (i, 0))
    out_spec = pl.BlockSpec((TB, Lp), lambda i: (i, 0))

    def resident(shape):
        # Grid-invariant operand: constant index_map + single VMEM buffer
        # (double-buffering a never-changing block buys nothing).
        return pl.BlockSpec(shape, lambda i: (0, 0),
                            pipeline_mode=pl.Buffered(1))

    out = pl.pallas_call(
        _freq_mlp_kernel,
        out_shape=jax.ShapeDtypeStruct((Bp, Lp), out_dtype),
        grid=grid,
        in_specs=[
            batch_spec,
            resident((Dp, Hp)), resident((1, Hp)),
            resident((Hp, Hp)), resident((1, Hp)),
            resident((Hp, Lp)), resident((1, Lp)),
        ],
        out_specs=out_spec,
        compiler_params=pltpu.CompilerParams(
            dimension_semantics=("parallel",),
            # Allow the concat/pad/bf16-cast producer of x to fuse into the
            # kernel's input stream (removes a separate HBM round-trip).
            allow_input_fusion=[True, False, False, False, False, False, False],
            vmem_limit_bytes=vmem_limit),
    )(x, params["w1"], params["b1"], params["w2"], params["b2"],
      params["w3"], params["b3"])

    return out[:B, :latent_dim]


def init_params(key, seq_channels, seq_length, future_seq_channels,
                future_seq_length, hidden_size, latent_dim):
    d_obs = seq_channels * seq_length
    d_ff = (future_seq_channels * future_seq_length
            if future_seq_channels is not None else 0)
    d_in = d_obs + d_ff                                        # all_input_channel

    def linear(k, din, dout):
        kw, kb = jax.random.split(k)
        s = 1.0 / np.sqrt(din)
        w = jax.random.uniform(kw, (din, dout), jnp.float32, -s, s)
        b = jax.random.uniform(kb, (1, dout), jnp.float32, -s, s)
        return np.asarray(w, np.float64), np.asarray(b, np.float64)

    k1, k2, k3 = jax.random.split(key, 3)
    w1, b1 = linear(k1, d_in, hidden_size)
    w2, b2 = linear(k2, hidden_size, hidden_size)
    w3, b3 = linear(k3, hidden_size, latent_dim)

    # Fold the ortho rDFT basis into the observed part of w1 (offline, exact):
    #   h_obs[b, k*C+c] = sum_l W[k,l] x[b,l,c]
    #   => w1a_eff[l*C+c, h] = sum_k W[k,l] * w1a[k*C+c, h]
    W = _make_rdft_matrix(seq_length)                          # (L, L)
    w1a = w1[:d_obs].reshape(seq_length, seq_channels, hidden_size)
    w1a_eff = np.einsum("kl,kch->lch", W, w1a).reshape(d_obs, hidden_size)
    w1_eff = np.concatenate([w1a_eff, w1[d_obs:]], axis=0)     # (d_in, H)

    # Pad to MXU / lane-friendly sizes (multiples of 128); zero padding keeps
    # the math exact (extra hidden units get 0 pre-activation, 0 weight out).
    Dp = _round_up(d_in, 128)
    Hp = _round_up(hidden_size, 128)
    Lp = _round_up(latent_dim, 128)

    def pad2(a, r, c):
        out = np.zeros((r, c), np.float64)
        out[:a.shape[0], :a.shape[1]] = a
        return out

    params = {
        "w1": jnp.asarray(pad2(w1_eff, Dp, Hp), jnp.bfloat16),
        "b1": jnp.asarray(pad2(b1, 1, Hp), jnp.float32),
        "w2": jnp.asarray(pad2(w2, Hp, Hp), jnp.bfloat16),
        "b2": jnp.asarray(pad2(b2, 1, Hp), jnp.float32),
        "w3": jnp.asarray(pad2(w3, Hp, Lp), jnp.bfloat16),
        "b3": jnp.asarray(pad2(b3, 1, Lp), jnp.float32),
        "latent_dim": latent_dim,
        # full-precision originals, used only by the numpy reference
        "_ref": {"w1": w1, "b1": b1, "w2": w2, "b2": b2, "w3": w3, "b3": b3},
    }
    return params


# -----------------------------------------------------------------------------
# Pure numpy reference (uses np.fft.rfft directly, independent of the kernel
# and of the DFT-folded / padded weights).
# -----------------------------------------------------------------------------
def reference(observed_data, future_features, params):
    r = params["_ref"]
    x = np.asarray(observed_data, dtype=np.float64)
    B, L, _ = x.shape
    f = np.fft.rfft(x, axis=1, norm="ortho")
    re, im = f.real, f.imag[:, 1:]
    if L % 2 == 0:
        im = im[:, :-1]
    xt = np.concatenate([re, im], axis=1)                      # (B, L, C)
    h = np.concatenate(
        [xt.reshape(B, -1),
         np.asarray(future_features, dtype=np.float64).reshape(B, -1)], axis=-1)
    h = np.maximum(h @ r["w1"] + r["b1"], 0.0)
    h = np.maximum(h @ r["w2"] + r["b2"], 0.0)
    return h @ r["w3"] + r["b3"]


if __name__ == "__main__":
    B = 2
    seq_channels, seq_length = 4, 16
    future_seq_channels, future_seq_length = 2, 8
    hidden_size, latent_dim = 32, 32

    key = jax.random.PRNGKey(0)
    k_obs, k_ff, k_params = jax.random.split(key, 3)
    observed_data = jax.random.normal(k_obs, (B, seq_length, seq_channels),
                                      jnp.float32)
    future_features = jax.random.normal(k_ff, (B, future_seq_length,
                                               future_seq_channels), jnp.float32)
    params = init_params(k_params, seq_channels, seq_length,
                         future_seq_channels, future_seq_length,
                         hidden_size, latent_dim)

    # jit so the concat/pad/bf16-cast prologue can fuse into the pallas_call
    # (allow_input_fusion) instead of making its own HBM round-trip.
    fwd = jax.jit(lambda od, ff: freq_mlp_conditioner(od, ff, params))
    out = jax.block_until_ready(fwd(observed_data, future_features))

    ref = reference(observed_data, future_features, params)
    max_diff = float(np.max(np.abs(np.asarray(out, dtype=np.float64) - ref)))
    assert out.shape == (B, latent_dim), out.shape
    assert max_diff < 0.1, f"max abs diff vs reference: {max_diff}"
    print("KERNEL_OK")
</pallas_src>

<mosaic_0001>
module attributes {stable_mosaic.version = 11 : i64} {
  func.func @_freq_mlp_kernel(%arg0: i32, %arg1: memref<8x128xbf16, #tpu.memory_space<vmem>>, %arg2: memref<128x128xbf16, #tpu.memory_space<vmem>>, %arg3: memref<1x128xf32, #tpu.memory_space<vmem>>, %arg4: memref<128x128xbf16, #tpu.memory_space<vmem>>, %arg5: memref<1x128xf32, #tpu.memory_space<vmem>>, %arg6: memref<128x128xbf16, #tpu.memory_space<vmem>>, %arg7: memref<1x128xf32, #tpu.memory_space<vmem>>, %arg8: memref<8x128xbf16, #tpu.memory_space<vmem>>) attributes {dimension_semantics = [#tpu.dimension_semantics<parallel>], iteration_bounds = array<i64: 1>, scalar_prefetch = 0 : i64, scratch_operands = 0 : i64, tpu.core_type = #tpu.core_type<tc>, window_params = [{transform_indices = @transform_0, window_bounds = array<i64: 8, 128>}, {pipeline_mode = #tpu.pipeline_mode<synchronous>, transform_indices = @transform_1, window_bounds = array<i64: 128, 128>}, {pipeline_mode = #tpu.pipeline_mode<synchronous>, transform_indices = @transform_2, window_bounds = array<i64: 1, 128>}, {pipeline_mode = #tpu.pipeline_mode<synchronous>, transform_indices = @transform_3, window_bounds = array<i64: 128, 128>}, {pipeline_mode = #tpu.pipeline_mode<synchronous>, transform_indices = @transform_4, window_bounds = array<i64: 1, 128>}, {pipeline_mode = #tpu.pipeline_mode<synchronous>, transform_indices = @transform_5, window_bounds = array<i64: 128, 128>}, {pipeline_mode = #tpu.pipeline_mode<synchronous>, transform_indices = @transform_6, window_bounds = array<i64: 1, 128>}, {transform_indices = @transform_7, window_bounds = array<i64: 8, 128>}]} {
    %c0 = arith.constant 0 : index
    %c0_0 = arith.constant 0 : index
    %0 = vector.load %arg1[%c0, %c0_0] : memref<8x128xbf16, #tpu.memory_space<vmem>>, vector<8x128xbf16>
    %c0_1 = arith.constant 0 : index
    %c0_2 = arith.constant 0 : index
    %1 = vector.load %arg2[%c0_1, %c0_2] : memref<128x128xbf16, #tpu.memory_space<vmem>>, vector<128x128xbf16>
    %cst = arith.constant dense<0.000000e+00> : vector<8x128xf32>
    %2 = tpu.matmul %0, %1, %cst {dimension_numbers = #tpu.dot_dimension_numbers<[1], [0], [0], [1], [0, 0, 1, 1], [], []>} : vector<8x128xbf16>, vector<128x128xbf16>, vector<8x128xf32> -> vector<8x128xf32>
    %c0_3 = arith.constant 0 : index
    %c0_4 = arith.constant 0 : index
    %3 = vector.load %arg3[%c0_3, %c0_4] : memref<1x128xf32, #tpu.memory_space<vmem>>, vector<1x128xf32>
    %4 = vector.broadcast %3 : vector<1x128xf32> to vector<8x128xf32>
    %5 = arith.addf %2, %4 : vector<8x128xf32>
    %cst_5 = arith.constant 0.000000e+00 : f32
    %6 = vector.broadcast %cst_5 : f32 to vector<8x128xf32>
    %7 = arith.maximumf %5, %6 : vector<8x128xf32>
    %8 = arith.truncf %7 : vector<8x128xf32> to vector<8x128xbf16>
    %c0_6 = arith.constant 0 : index
    %c0_7 = arith.constant 0 : index
    %9 = vector.load %arg4[%c0_6, %c0_7] : memref<128x128xbf16, #tpu.memory_space<vmem>>, vector<128x128xbf16>
    %cst_8 = arith.constant dense<0.000000e+00> : vector<8x128xf32>
    %10 = tpu.matmul %8, %9, %cst_8 {dimension_numbers = #tpu.dot_dimension_numbers<[1], [0], [0], [1], [0, 0, 1, 1], [], []>} : vector<8x128xbf16>, vector<128x128xbf16>, vector<8x128xf32> -> vector<8x128xf32>
    %c0_9 = arith.constant 0 : index
    %c0_10 = arith.constant 0 : index
    %11 = vector.load %arg5[%c0_9, %c0_10] : memref<1x128xf32, #tpu.memory_space<vmem>>, vector<1x128xf32>
    %12 = vector.broadcast %11 : vector<1x128xf32> to vector<8x128xf32>
    %13 = arith.addf %10, %12 : vector<8x128xf32>
    %cst_11 = arith.constant 0.000000e+00 : f32
    %14 = vector.broadcast %cst_11 : f32 to vector<8x128xf32>
    %15 = arith.maximumf %13, %14 : vector<8x128xf32>
    %16 = arith.truncf %15 : vector<8x128xf32> to vector<8x128xbf16>
    %c0_12 = arith.constant 0 : index
    %c0_13 = arith.constant 0 : index
    %17 = vector.load %arg6[%c0_12, %c0_13] : memref<128x128xbf16, #tpu.memory_space<vmem>>, vector<128x128xbf16>
    %cst_14 = arith.constant dense<0.000000e+00> : vector<8x128xf32>
    %18 = tpu.matmul %16, %17, %cst_14 {dimension_numbers = #tpu.dot_dimension_numbers<[1], [0], [0], [1], [0, 0, 1, 1], [], []>} : vector<8x128xbf16>, vector<128x128xbf16>, vector<8x128xf32> -> vector<8x128xf32>
    %c0_15 = arith.constant 0 : index
    %c0_16 = arith.constant 0 : index
    %19 = vector.load %arg7[%c0_15, %c0_16] : memref<1x128xf32, #tpu.memory_space<vmem>>, vector<1x128xf32>
    %20 = vector.broadcast %19 : vector<1x128xf32> to vector<8x128xf32>
    %21 = arith.addf %18, %20 : vector<8x128xf32>
    %22 = arith.truncf %21 : vector<8x128xf32> to vector<8x128xbf16>
    %c0_17 = arith.constant 0 : index
    %c0_18 = arith.constant 0 : index
    %23 = vector.load %arg8[%c0_17, %c0_18] : memref<8x128xbf16, #tpu.memory_space<vmem>>, vector<8x128xbf16>
    tpu.vector_store %arg8[%c0_17, %c0_18], %22 {strides = array<i32>} : memref<8x128xbf16, #tpu.memory_space<vmem>>, vector<8x128xbf16>,
    return
  }
  func.func @transform_0(%arg0: i32) -> (i32, i32) {
    %c0_i32 = arith.constant 0 : i32
    %c0_i32_0 = arith.constant 0 : i32
    return %arg0, %c0_i32 : i32, i32
  }
  func.func @transform_1(%arg0: i32) -> (i32, i32) {
    %c0_i32 = arith.constant 0 : i32
    %c0_i32_0 = arith.constant 0 : i32
    %c0_i32_1 = arith.constant 0 : i32
    return %c0_i32, %c0_i32_0 : i32, i32
  }
  func.func @transform_2(%arg0: i32) -> (i32, i32) {
    %c0_i32 = arith.constant 0 : i32
    %c0_i32_0 = arith.constant 0 : i32
    %c0_i32_1 = arith.constant 0 : i32
    return %c0_i32, %c0_i32_0 : i32, i32
  }
  func.func @transform_3(%arg0: i32) -> (i32, i32) {
    %c0_i32 = arith.constant 0 : i32
    %c0_i32_0 = arith.constant 0 : i32
    %c0_i32_1 = arith.constant 0 : i32
    return %c0_i32, %c0_i32_0 : i32, i32
  }
  func.func @transform_4(%arg0: i32) -> (i32, i32) {
    %c0_i32 = arith.constant 0 : i32
    %c0_i32_0 = arith.constant 0 : i32
    %c0_i32_1 = arith.constant 0 : i32
    return %c0_i32, %c0_i32_0 : i32, i32
  }
  func.func @transform_5(%arg0: i32) -> (i32, i32) {
    %c0_i32 = arith.constant 0 : i32
    %c0_i32_0 = arith.constant 0 : i32
    %c0_i32_1 = arith.constant 0 : i32
    return %c0_i32, %c0_i32_0 : i32, i32
  }
  func.func @transform_6(%arg0: i32) -> (i32, i32) {
    %c0_i32 = arith.constant 0 : i32
    %c0_i32_0 = arith.constant 0 : i32
    %c0_i32_1 = arith.constant 0 : i32
    return %c0_i32, %c0_i32_0 : i32, i32
  }
  func.func @transform_7(%arg0: i32) -> (i32, i32) {
    %c0_i32 = arith.constant 0 : i32
    %c0_i32_0 = arith.constant 0 : i32
    return %arg0, %c0_i32 : i32, i32
  }
}

</mosaic_0001>

<llo_original>
// kernel: _lambda_.2
$region0: #{_lambda_.2}
  #allocation0 [shape = 'u32[]', space=smem, size = 0x4, offset = 0x4, fixed_abs, tag = 'smem constant byte address 0x4 - core index']
  #allocation1 [shape = 'u32[144,128]{1,0:T(1,128)}', space=vmem, size = 0x12000, scoped, tag = 'internal scratch']
  #allocation2 [shape = 'u32[2048]{0}', space=vmem, size = 0x2000, scoped, tag = 'scoped memory for _lambda_.2']
  #allocation3 [shape = 'u32[2048]{0}', space=vmem, size = 0x2000, scoped, tag = 'scoped memory for _lambda_.2']
  #allocation4 [shape = 'u32[2048]{0}', space=vmem, size = 0x2000, scoped, tag = 'scoped memory for _lambda_.2']
  #allocation5 [shape = 'u32[2048]{0}', space=vmem, size = 0x2000, scoped, tag = 'scoped memory for _lambda_.2']
  #allocation6 [shape = 'u32[2048]{0}', space=vmem, size = 0x2000, scoped, tag = 'scoped memory for _lambda_.2']
  #allocation7 [shape = 'u32[2048]{0}', space=vmem, size = 0x2000, scoped, tag = 'scoped memory for _lambda_.2']
  #allocation8 [shape = 'u32[2048]{0}', space=vmem, size = 0x2000, scoped, tag = 'scoped memory for _lambda_.2']
  #allocation9 [shape = 'u32[2048]{0}', space=vmem, size = 0x2000, scoped, tag = 'scoped memory for _lambda_.2']
  #allocation10 [shape = 'u32[2048]{0}', space=vmem, size = 0x2000, scoped, tag = 'scoped memory for _lambda_.2']
  #allocation11 [shape = 'u32[2048]{0}', space=vmem, size = 0x2000, scoped, tag = 'scoped memory for _lambda_.2']
  %s0 = inlined_call_operand.hbm [shape: bf16[128,128], index: 0, kind: input, shape index: {}]
  %s1 = inlined_call_operand.vmem [shape: f32[1,128], index: 1, kind: input, shape index: {}]
  %s2 = inlined_call_operand.vmem [shape: bf16[128,128], index: 2, kind: input, shape index: {}]
  %s3 = inlined_call_operand.vmem [shape: f32[1,128], index: 3, kind: input, shape index: {}]
  %s4 = inlined_call_operand.hbm [shape: bf16[128,128], index: 4, kind: input, shape index: {}]
  %s5 = inlined_call_operand.vmem [shape: f32[1,128], index: 5, kind: input, shape index: {}]
  %s6 = inlined_call_operand.vmem [shape: bf16[2,16], index: 6, kind: input, shape index: {}]
  %s7 = inlined_call_operand.<no memory space> [shape: bf16[], index: 7, kind: input, shape index: {}]
  %s8 = inlined_call_operand.<no memory space> [shape: s32[], index: 8, kind: input, shape index: {}]
  %s9 = inlined_call_operand.<no memory space> [shape: s32[], index: 9, kind: input, shape index: {}]
  %s10 = inlined_call_operand.vmem [shape: bf16[2,64], index: 10, kind: input, shape index: {}]
  %s11 = inlined_call_operand.<no memory space> [shape: bf16[], index: 11, kind: input, shape index: {}]
  %s12 = inlined_call_operand.vmem [shape: bf16[8,128], index: 12, kind: output, shape index: {}]
  %s13 = sld [smem:[#allocation0]]
  $region50: #{_lambda_.2} parent=0
    _
  %s15 = ssub.s32 1, %s13
  %s16 = scalar_select 0, %s15, %s13
  %v17 = vstv %s7
  %v18 = vunpack.i.l.bf16 %v17
  %v20 = vunpack.i.h.bf16 %v17
  %v22 = vstv %s8
  %v23 = vstv %s9
  %v24 = vstv %s7
  %v25 = vunpack.i.l.bf16 %v24
  %v27 = vunpack.i.h.bf16 %v24
  %v29 = vstv %s11
  %v30 = vunpack.i.l.bf16 %v29
  %v32 = vunpack.i.h.bf16 %v29
  $region1: #{_lambda_.2} parent=0
    #allocation12 [shape = 'u8[32768]{0}', space=vmem, size = 0x8000, scoped, tag = 'input window, operand 1, single buffered']
    #allocation13 [shape = 's32[1]{0}', space=sflag, size = 0x4, scoped, tag = 'scoped memory for _lambda_.2']
    #allocation14 [shape = 'u8[32768]{0}', space=vmem, size = 0x8000, scoped, tag = 'input window, operand 5, single buffered']
    #allocation15 [shape = 's32[1]{0}', space=sflag, size = 0x4, scoped, tag = 'scoped memory for _lambda_.2']
    #allocation16 [shape = 'u8[2048]{0}', space=vmem, size = 0x800, dematerialized = true, scoped, tag = 'FusionAdapter Buffer %fusion.7 = bf16[8,128]{1,0:T(8,128)(2,1)} fusion(%param_6.6, %param_7.6, %param_8.6, %param_9.7, %param_10.8, %param_11.4), kind=kLoop, calls=%fused_computation.7.clone.clone, metadata={op_name="jit(<lambda>)/concatenate" stack_frame_id=10}']
    %34 = vsyncpa [#allocation13], 0
    %35 = vsyncpa [#allocation15], 0
    // Predicated region
    $region2: #{_lambda_.2} parent=1 // pred_check
      _
    $region3: #{_lambda_.2} parent=1 // pred_check_branch
      %37 = sbr.rel (0) target = $region5
    $region4: #{_lambda_.2} parent=1 // pred_region
      %s39 = ssub.s32 1, 0
      %s40 = smul.u32 16, %s39
      %p41 = scmp.lt.s32.totalorder 0, 0
      %s42 = scalar_select %p41, 0, 0
      %s43 = scalar_lea.vmem %s6, %s42
      %s45 = ssub.s32 1, 0
      %s46 = smul.u32 16, %s45
    $region5: #{_lambda_.2} parent=1 // pred_fallthru
      _
    // Predicated region
    $region6: #{_lambda_.2} parent=1 // pred_check
      _
    $region7: #{_lambda_.2} parent=1 // pred_check_branch
      %48 = sbr.rel (0) target = $region9
    $region8: #{_lambda_.2} parent=1 // pred_region
      _
    $region9: #{_lambda_.2} parent=1 // pred_fallthru
      _
    // Predicated region
    $region10: #{_lambda_.2} parent=1 // pred_check
      _
    $region11: #{_lambda_.2} parent=1 // pred_check_branch
      %50 = sbr.rel (0) target = $region13
    $region12: #{_lambda_.2} parent=1 // pred_region
      %s52 = ssub.s32 1024, 1024
      %53 = vsyncadd [#allocation13], %s52
      %s54 = sshll.u32 [#allocation12], 4
      %s55 = int_to_ptr.vmem [resolvable:$true] %s54
      %60 = dma.hbm_to_vmem [thread:$0]  %s0, 1024, %s55, [#allocation13], 128, 128, 8
    $region13: #{_lambda_.2} parent=1 // pred_fallthru
      _
    // Predicated region
    $region14: #{_lambda_.2} parent=1 // pred_check
      _
    $region15: #{_lambda_.2} parent=1 // pred_check_branch
      %62 = sbr.rel (0) target = $region17
    $region16: #{_lambda_.2} parent=1 // pred_region
      _
    $region17: #{_lambda_.2} parent=1 // pred_fallthru
      _
    // Predicated region
    $region18: #{_lambda_.2} parent=1 // pred_check
      _
    $region19: #{_lambda_.2} parent=1 // pred_check_branch
      %64 = sbr.rel (0) target = $region21
    $region20: #{_lambda_.2} parent=1 // pred_region
      _
    $region21: #{_lambda_.2} parent=1 // pred_fallthru
      _
    // Predicated region
    $region22: #{_lambda_.2} parent=1 // pred_check
      _
    $region23: #{_lambda_.2} parent=1 // pred_check_branch
      %66 = sbr.rel (0) target = $region25
    $region24: #{_lambda_.2} parent=1 // pred_region
      _
    $region25: #{_lambda_.2} parent=1 // pred_fallthru
      _
    // Predicated region
    $region26: #{_lambda_.2} parent=1 // pred_check
      _
    $region27: #{_lambda_.2} parent=1 // pred_check_branch
      %68 = sbr.rel (0) target = $region29
    $region28: #{_lambda_.2} parent=1 // pred_region
      %s70 = ssub.s32 1024, 1024
      %71 = vsyncadd [#allocation15], %s70
      %s72 = sshll.u32 [#allocation14], 4
      %s73 = int_to_ptr.vmem [resolvable:$true] %s72
      %78 = dma.hbm_to_vmem [thread:$0]  %s4, 1024, %s73, [#allocation15], 128, 128, 8
    $region29: #{_lambda_.2} parent=1 // pred_fallthru
      _
    // Predicated region
    $region30: #{_lambda_.2} parent=1 // pred_check
      _
    $region31: #{_lambda_.2} parent=1 // pred_check_branch
      %80 = sbr.rel (0) target = $region33
    $region32: #{_lambda_.2} parent=1 // pred_region
      _
    $region33: #{_lambda_.2} parent=1 // pred_fallthru
      _
    // Predicated region
    $region34: #{_lambda_.2} parent=1 // pred_check
      _
    $region35: #{_lambda_.2} parent=1 // pred_check_branch
      %82 = sbr.rel (0) target = $region37
    $region36: #{_lambda_.2} parent=1 // pred_region
      %83 = dma.done [#allocation13], 1024
    $region37: #{_lambda_.2} parent=1 // pred_fallthru
      _
    // Predicated region
    $region38: #{_lambda_.2} parent=1 // pred_check
      _
    $region39: #{_lambda_.2} parent=1 // pred_check_branch
      %85 = sbr.rel (0) target = $region41
    $region40: #{_lambda_.2} parent=1 // pred_region
      %86 = dma.done [#allocation15], 1024
    $region41: #{_lambda_.2} parent=1 // pred_fallthru
      _
    %s88 = ssub.s32 1, 0
    %s89 = smul.u32 16, %s88
    %p90 = scmp.lt.s32.totalorder 0, 0
    %s91 = scalar_select %p90, 0, 0
    %s92 = scalar_lea.vmem %s6, %s91
    %s94 = ssub.s32 1, 0
    %s95 = smul.u32 16, %s94
    %p96 = scmp.lt.s32.totalorder 0, 0
    %s97 = scalar_select %p96, 0, 0
    %s98 = scalar_lea.vmem %s6, %s97
    %s100 = ssub.s32 1, 0
    %s101 = smul.u32 16, %s100
    %s102 = ssub.s32 0, 0
    %p103 = scmp.lt.s32.totalorder %s102, 0
    %s104 = scalar_select %p103, 0, 255
    %s105 = sand.u32 3, %s104
    %s106 = sshrl.u32 %s105, 1
    %s107 = sor.u32 %s105, %s106
    %s108 = sand.u32 %s107, 1
    %v109 = vld [vmem:[%s98] sm:%s108]
    %v110 = vunpack.c.l.bf16 %v109
    %v111 = vunpack.c.h.bf16 %v109
    %v112 = vlaneseq
    %v113 = vshrl.u32 %v112, 7
    %vm115 = vcmp.lt.s32.totalorder %v113, 2
    %v116 = vsel %vm115, %v110, %v18
    %v117 = vlaneseq
    %v118 = vand.u32 %v117, 127
    %v119 = vadd.s32 %v118, 128
    %vm120 = vcmp.lt.s32.totalorder %v119, 144
    %v121 = vsel %vm120, %v116, %v18
    %v122 = vlaneseq
    %v123 = vand.u32 %v122, 127
    %vm124 = vcmp.lt.s32.totalorder %v123, 64
    %v125 = vsel %vm124, %v121, %v18
    %126 = vrot.lane.b32.xlu0 %v125, 64
    %v127 = vpop.permute.xlu0 %126
    %s129 = sor.u32 3, 1
    %s130 = sand.u32 %s129, 1
    %v131 = vld [vmem:[%s10] sm:%s130]
    %v132 = vunpack.c.l.bf16 %v131
    %v133 = vunpack.c.h.bf16 %v131
    %v134 = vlaneseq
    %v135 = vshrl.u32 %v134, 7
    %vm137 = vcmp.lt.s32.totalorder %v135, 2
    %v138 = vsel %vm137, %v132, %v25
    %v139 = vlaneseq
    %v140 = vand.u32 %v139, 127
    %vm142 = vcmp.lt.s32.totalorder %v140, 64
    %v143 = vsel %vm142, %v138, %v25
    %v144 = vlaneseq
    %v145 = vshrl.u32 %v144, 7
    %148 = xla_tuple %v145, %v23
    %149 = xla_tuple %148
    %vm150 = vcmp.lt.s32.totalorder %v145, %v23
    %v151 = vsel %vm150, 1, 0
    %152 = xla_tuple %v151
    %v153 = vlaneseq
    %v154 = vand.u32 %v153, 127
    %157 = xla_tuple %v154, %v22
    %158 = xla_tuple %157
    %vm159 = vcmp.lt.s32.totalorder %v154, %v22
    %v160 = vsel %vm159, 1, 0
    %161 = xla_tuple %v160
    %v162 = vand.u32 %v151, %v160
    %163 = xla_tuple %v151, %v143, %v30
    %164 = xla_tuple %163
    %v165 = vsel %vm150, %v143, %v30
    %166 = xla_tuple %v165
    %167 = xla_tuple %v162, %v165, %v30
    %168 = xla_tuple %167
    %vm169 = vcmp.ne.s32.totalorder %v162, 0
    %v170 = vsel %vm169, %v165, %v30
    %171 = xla_tuple %v170
    %172 = xla_tuple %v151, %v127, %v30
    %173 = xla_tuple %172
    %v174 = vsel %vm150, %v127, %v30
    %175 = xla_tuple %v174
    %176 = xla_tuple %v162, %v174, %v30
    %177 = xla_tuple %176
    %vm178 = vcmp.ne.s32.totalorder %v162, 0
    %v179 = vsel %vm178, %v174, %v30
    %180 = xla_tuple %v179
    %181 = xla_tuple %v170, %v179
    %182 = xla_tuple %181
    %v183 = vmax.f32 %v170, %v179
    %184 = xla_tuple %v183
    %v185 = vpack.c.bf16 0.0, %v183
    %187 = vst [vmem:[#allocation16] sm:$0xf] %v185
    %v189 = vld [vmem:[#allocation16] sm:$0xf]
    %v190 = vld [vmem:[#allocation12] sm:$0xff]
    %v191 = vld [vmem:[#allocation12 + $0x8] sm:$0xff]
    %v192 = vld [vmem:[#allocation12 + $0x10] sm:$0xff]
    %v193 = vld [vmem:[#allocation12 + $0x18] sm:$0xff]
    %v194 = vld [vmem:[#allocation12 + $0x20] sm:$0xff]
    %v195 = vld [vmem:[#allocation12 + $0x28] sm:$0xff]
    %v196 = vld [vmem:[#allocation12 + $0x30] sm:$0xff]
    %v197 = vld [vmem:[#allocation12 + $0x38] sm:$0xff]
    %v198 = vld [vmem:[%s1] sm:$0x1]
    %v200 = vlaneseq
    %v201 = vshrl.u32 %v200, 7
    %v202 = vsub.s32 0, %v201
    %v203 = vrot.slane %v198, %v202
    %205 = vmatprep.subr.bf16.mxu0 0
    %206 = vmatpush1.bf16.msra.mxu0 %v190
    %207 = vmatprep.subr.bf16.mxu0 0
    %208 = vmatpush1.bf16.msra.mxu0 %v191
    %209 = vmatprep.subr.bf16.mxu0 0
    %210 = vmatpush1.bf16.msra.mxu0 %v192
    %211 = vmatprep.subr.bf16.mxu0 0
    %212 = vmatpush1.bf16.msra.mxu0 %v193
    %213 = vmatprep.subr.bf16.mxu0 0
    %214 = vmatpush1.bf16.msra.mxu0 %v194
    %215 = vmatprep.subr.bf16.mxu0 0
    %216 = vmatpush1.bf16.msra.mxu0 %v195
    %217 = vmatprep.subr.bf16.mxu0 0
    %218 = vmatpush1.bf16.msra.mxu0 %v196
    %219 = vmatprep.subr.bf16.mxu0 0
    %220 = vmatpush1.bf16.msra.mxu0 %v197
    %221 = vmatprep.subr.bf16.mxu0 0
    %222 = vmatpush1.bf16.msra.mxu0 0
    %223 = vmatprep.subr.bf16.mxu0 0
    %224 = vmatpush1.bf16.msra.mxu0 0
    %225 = vmatprep.subr.bf16.mxu0 0
    %226 = vmatpush1.bf16.msra.mxu0 0
    %227 = vmatprep.subr.bf16.mxu0 0
    %228 = vmatpush1.bf16.msra.mxu0 0
    %229 = vmatprep.subr.bf16.mxu0 0
    %230 = vmatpush1.bf16.msra.mxu0 0
    %231 = vmatprep.subr.bf16.mxu0 0
    %232 = vmatpush1.bf16.msra.mxu0 0
    %233 = vmatprep.subr.bf16.mxu0 0
    %234 = vmatpush1.bf16.msra.mxu0 0
    %235 = vmatprep.subr.bf16.mxu0 0
    %236 = vmatpush1.bf16.msra.mxu0 0
    %237 = vmatprep.mubr.bf16.mxu0 0
    %238 = vmatmul.mubr.bf16.gmra.mrb[0].mxu0 %v189
    %v239 = vpop.f32.mrb[0].mxu0
    %v240 = vadd.f32 %v203, %v239
    %v241 = vpop.f32.mrb[0].mxu0
    %v242 = vpop.f32.mrb[0].mxu0
    %v243 = vpop.f32.mrb[0].mxu0
    %244 = vdwg.mxu0
    %v245 = vmax.f32 %v240, 0.0
    %v246 = vpack.c.bf16 %v245, %v245
    %v247 = vld [vmem:[%s2] sm:$0xff]
    %v248 = vld [vmem:[%s2 + $0x8] sm:$0xff]
    %v249 = vld [vmem:[%s2 + $0x10] sm:$0xff]
    %v250 = vld [vmem:[%s2 + $0x18] sm:$0xff]
    %v251 = vld [vmem:[%s2 + $0x20] sm:$0xff]
    %v252 = vld [vmem:[%s2 + $0x28] sm:$0xff]
    %v253 = vld [vmem:[%s2 + $0x30] sm:$0xff]
    %v254 = vld [vmem:[%s2 + $0x38] sm:$0xff]
    %v255 = vld [vmem:[%s3] sm:$0x1]
    %v257 = vlaneseq
    %v258 = vshrl.u32 %v257, 7
    %v259 = vsub.s32 0, %v258
    %v260 = vrot.slane %v255, %v259
    %262 = vmatprep.subr.bf16.mxu0 0
    %263 = vmatpush1.bf16.msra.mxu0 %v247
    %264 = vmatprep.subr.bf16.mxu0 0
    %265 = vmatpush1.bf16.msra.mxu0 %v248
    %266 = vmatprep.subr.bf16.mxu0 0
    %267 = vmatpush1.bf16.msra.mxu0 %v249
    %268 = vmatprep.subr.bf16.mxu0 0
    %269 = vmatpush1.bf16.msra.mxu0 %v250
    %270 = vmatprep.subr.bf16.mxu0 0
    %271 = vmatpush1.bf16.msra.mxu0 %v251
    %272 = vmatprep.subr.bf16.mxu0 0
    %273 = vmatpush1.bf16.msra.mxu0 %v252
    %274 = vmatprep.subr.bf16.mxu0 0
    %275 = vmatpush1.bf16.msra.mxu0 %v253
    %276 = vmatprep.subr.bf16.mxu0 0
    %277 = vmatpush1.bf16.msra.mxu0 %v254
    %278 = vmatprep.subr.bf16.mxu0 0
    %279 = vmatpush1.bf16.msra.mxu0 0
    %280 = vmatprep.subr.bf16.mxu0 0
    %281 = vmatpush1.bf16.msra.mxu0 0
    %282 = vmatprep.subr.bf16.mxu0 0
    %283 = vmatpush1.bf16.msra.mxu0 0
    %284 = vmatprep.subr.bf16.mxu0 0
    %285 = vmatpush1.bf16.msra.mxu0 0
    %286 = vmatprep.subr.bf16.mxu0 0
    %287 = vmatpush1.bf16.msra.mxu0 0
    %288 = vmatprep.subr.bf16.mxu0 0
    %289 = vmatpush1.bf16.msra.mxu0 0
    %290 = vmatprep.subr.bf16.mxu0 0
    %291 = vmatpush1.bf16.msra.mxu0 0
    %292 = vmatprep.subr.bf16.mxu0 0
    %293 = vmatpush1.bf16.msra.mxu0 0
    %294 = vmatprep.mubr.bf16.mxu0 0
    %295 = vmatmul.mubr.bf16.gmra.mrb[0].mxu0 %v246
    %v296 = vpop.f32.mrb[0].mxu0
    %v297 = vadd.f32 %v260, %v296
    %v298 = vpop.f32.mrb[0].mxu0
    %v299 = vpop.f32.mrb[0].mxu0
    %v300 = vpop.f32.mrb[0].mxu0
    %301 = vdwg.mxu0
    %v302 = vmax.f32 %v297, 0.0
    %v303 = vpack.c.bf16 %v302, %v302
    %v304 = vld [vmem:[#allocation14] sm:$0xff]
    %v305 = vld [vmem:[#allocation14 + $0x8] sm:$0xff]
    %v306 = vld [vmem:[#allocation14 + $0x10] sm:$0xff]
    %v307 = vld [vmem:[#allocation14 + $0x18] sm:$0xff]
    %v308 = vld [vmem:[#allocation14 + $0x20] sm:$0xff]
    %v309 = vld [vmem:[#allocation14 + $0x28] sm:$0xff]
    %v310 = vld [vmem:[#allocation14 + $0x30] sm:$0xff]
    %v311 = vld [vmem:[#allocation14 + $0x38] sm:$0xff]
    %v312 = vld [vmem:[%s5] sm:$0x1]
    %v314 = vlaneseq
    %v315 = vshrl.u32 %v314, 7
    %v316 = vsub.s32 0, %v315
    %v317 = vrot.slane %v312, %v316
    %319 = vmatprep.subr.bf16.mxu0 0
    %320 = vmatpush1.bf16.msra.mxu0 %v304
    %321 = vmatprep.subr.bf16.mxu0 0
    %322 = vmatpush1.bf16.msra.mxu0 %v305
    %323 = vmatprep.subr.bf16.mxu0 0
    %324 = vmatpush1.bf16.msra.mxu0 %v306
    %325 = vmatprep.subr.bf16.mxu0 0
    %326 = vmatpush1.bf16.msra.mxu0 %v307
    %327 = vmatprep.subr.bf16.mxu0 0
    %328 = vmatpush1.bf16.msra.mxu0 %v308
    %329 = vmatprep.subr.bf16.mxu0 0
    %330 = vmatpush1.bf16.msra.mxu0 %v309
    %331 = vmatprep.subr.bf16.mxu0 0
    %332 = vmatpush1.bf16.msra.mxu0 %v310
    %333 = vmatprep.subr.bf16.mxu0 0
    %334 = vmatpush1.bf16.msra.mxu0 %v311
    %335 = vmatprep.subr.bf16.mxu0 0
    %336 = vmatpush1.bf16.msra.mxu0 0
    %337 = vmatprep.subr.bf16.mxu0 0
    %338 = vmatpush1.bf16.msra.mxu0 0
    %339 = vmatprep.subr.bf16.mxu0 0
    %340 = vmatpush1.bf16.msra.mxu0 0
    %341 = vmatprep.subr.bf16.mxu0 0
    %342 = vmatpush1.bf16.msra.mxu0 0
    %343 = vmatprep.subr.bf16.mxu0 0
    %344 = vmatpush1.bf16.msra.mxu0 0
    %345 = vmatprep.subr.bf16.mxu0 0
    %346 = vmatpush1.bf16.msra.mxu0 0
    %347 = vmatprep.subr.bf16.mxu0 0
    %348 = vmatpush1.bf16.msra.mxu0 0
    %349 = vmatprep.subr.bf16.mxu0 0
    %350 = vmatpush1.bf16.msra.mxu0 0
    %351 = vmatprep.mubr.bf16.mxu0 0
    %352 = vmatmul.mubr.bf16.gmra.mrb[0].mxu0 %v303
    %v353 = vpop.f32.mrb[0].mxu0
    %v354 = vadd.f32 %v317, %v353
    %v355 = vpop.f32.mrb[0].mxu0
    %v356 = vpop.f32.mrb[0].mxu0
    %v357 = vpop.f32.mrb[0].mxu0
    %358 = vdwg.mxu0
    %v359 = vpack.c.bf16 %v354, %v354
    %360 = vst [vmem:[%s12] sm:$0xf] %v359
    // Predicated region
    $region42: #{_lambda_.2} parent=1 // pred_check
      _
    $region43: #{_lambda_.2} parent=1 // pred_check_branch
      %362 = sbr.rel (0) target = $region45
    $region44: #{_lambda_.2} parent=1 // pred_region
      _
    $region45: #{_lambda_.2} parent=1 // pred_fallthru
      _
    // Predicated region
    $region46: #{_lambda_.2} parent=1 // pred_check
      _
    $region47: #{_lambda_.2} parent=1 // pred_check_branch
      %364 = sbr.rel (0) target = $region49
    $region48: #{_lambda_.2} parent=1 // pred_region
      _
    $region49: #{_lambda_.2} parent=1 // pred_fallthru
      _
    %365 = vsyncpa [#allocation13], 1
    %366 = vsyncpa [#allocation15], 1

</llo_original>
